<compile_context>
chip_gen: v7x
topology: tpu7x:2x2x1
jax: 0.10.0
libtpu: 0.0.40
codegen_flags: <defaults>
</compile_context>

<pallas_src>
import functools
import math

import jax
import jax.numpy as jnp
from jax.experimental import pallas as pl
from jax.experimental.pallas import tpu as pltpu

_LANE = 128
_FALLBACK_TILE = 64 * 1024        # tail-axis tile (elements) for unaligned path
_MIN_SPLIT_BYTES = 1 << 20        # above this, guarantee >=2 grid steps (v7x)


# ----------------------------------------------------------------------------
# Hardware-aware knobs
# ----------------------------------------------------------------------------
def _device_kind() -> str:
    try:
        return jax.devices()[0].device_kind.lower()
    except Exception:  # pragma: no cover - defensive
        return ""


def _is_v5e(kind: str) -> bool:
    return ("v5e" in kind) or ("v5 lite" in kind) or ("v5litepod" in kind)


def _target_block_bytes(kind: str) -> int:
    # ~4 MiB input/step amortizes step overhead everywhere; v7x (~3.2 TB/s per
    # TC) wants ~8 MiB to stay near the HBM roofline.
    return (8 << 20) if "v7" in kind else (4 << 20)


def _compute_dtype(x_dtype, kind):
    # v5e lacks bf16 VPU/EUP -> upcast there; v6e/v7x keep bf16 native
    # (halves vreg pressure and load/store work).  Everything else uses f32.
    if jnp.dtype(x_dtype) == jnp.dtype(jnp.bfloat16) and not _is_v5e(kind):
        return jnp.bfloat16
    return jnp.float32


def _sublane_multiple(dtype) -> int:
    return {4: 8, 2: 16, 1: 32}.get(jnp.dtype(dtype).itemsize, 8)


def _vmem_limit_bytes(block_bytes: int) -> int:
    # 2x for double-buffering plus margin; floor at 16 MiB (v5e scoped
    # default), cap safely under v7x's 64 MiB-per-TC physical VMEM.
    return int(min(48 << 20, max(16 << 20, 2 * block_bytes + (4 << 20))))


# ----------------------------------------------------------------------------
# Kernels
# ----------------------------------------------------------------------------
def _glu_kernel_tiled(x_ref, o_ref, *, compute_dtype):
    # x_ref: (OT, 2, RT, LANE) ; o_ref: (OT, 1, RT, LANE)
    a = x_ref[:, 0, :, :].astype(compute_dtype)
    g = x_ref[:, 1, :, :].astype(compute_dtype)
    o_ref[:, 0, :, :] = (a * jax.nn.sigmoid(g)).astype(o_ref.dtype)


def _glu_kernel_folded(x_ref, o_ref, *, rows, compute_dtype):
    # Chunk axis folded into the sublane axis for tiny `rows`.
    # x_ref: (OT, 2*rows, LANE) ; o_ref: (OT, rows, LANE)
    a = x_ref[:, :rows, :].astype(compute_dtype)
    g = x_ref[:, rows:, :].astype(compute_dtype)
    o_ref[...] = (a * jax.nn.sigmoid(g)).astype(o_ref.dtype)


def _glu_kernel_flat(x_ref, o_ref, *, compute_dtype):
    # Unaligned-tail fallback. x_ref: (1, 2, T) ; o_ref: (1, 1, T)
    a = x_ref[:, 0, :].astype(compute_dtype)
    g = x_ref[:, 1, :].astype(compute_dtype)
    o_ref[:, 0, :] = (a * jax.nn.sigmoid(g)).astype(o_ref.dtype)


# ----------------------------------------------------------------------------
# Tiling
# ----------------------------------------------------------------------------
def _pick_tiles(outer, rows, itemsize, sub, target_bytes):
    """(outer_tile, row_tile) near the byte target; cdiv grid masks partials."""
    target_rows = max(sub, target_bytes // (2 * _LANE * itemsize))
    if rows <= target_rows:
        row_tile = rows                              # full extent: always legal
    else:
        row_tile = max(sub, (target_rows // sub) * sub)

    outer_tile = 1
    if row_tile == rows:
        per_outer = 2 * rows * _LANE * itemsize
        outer_tile = min(outer, max(1, target_bytes // per_outer))

    # v7x has 2 TensorCores: don't collapse non-trivial work to one grid step
    # along the parallel axes (harmless on single-TC v5e/v6e).
    total_bytes = outer * 2 * rows * _LANE * itemsize
    if (pl.cdiv(outer, outer_tile) * pl.cdiv(rows, row_tile) == 1
            and total_bytes > _MIN_SPLIT_BYTES):
        if outer >= 2:
            outer_tile = pl.cdiv(outer, 2)
        elif rows >= 2 * sub:
            row_tile = max(sub, ((rows // 2) // sub) * sub)
    return int(outer_tile), int(row_tile)


# ----------------------------------------------------------------------------
# Wrapper
# ----------------------------------------------------------------------------
def glu_pallas(x: jax.Array, dim: int) -> jax.Array:
    """Pallas implementation of torch.chunk(x, 2, dim) -> a * sigmoid(gate)."""
    shape = x.shape
    dim = dim % len(shape)
    d = shape[dim]
    if d % 2 != 0:
        raise ValueError(f"GLU dim size must be even, got {d}")
    half = d // 2
    outer = math.prod(shape[:dim]) if dim > 0 else 1
    inner = math.prod(shape[dim + 1:]) if dim + 1 < len(shape) else 1
    tail = half * inner
    out_shape = shape[:dim] + (half,) + shape[dim + 1:]

    if outer == 0 or tail == 0:
        return jnp.zeros(out_shape, x.dtype)

    kind = _device_kind()
    cdt = _compute_dtype(x.dtype, kind)
    itemsize = jnp.dtype(x.dtype).itemsize
    sub = _sublane_multiple(x.dtype)
    target_bytes = _target_block_bytes(kind)

    if tail % _LANE == 0:
        rows = tail // _LANE

        if rows < sub:
            # Fold the size-2 chunk axis into sublanes -> full (8,128) vregs.
            per_outer = 2 * rows * _LANE * itemsize
            ot = min(outer, max(1, target_bytes // per_outer))
            if (pl.cdiv(outer, ot) == 1 and outer >= 2
                    and outer * per_outer > _MIN_SPLIT_BYTES):
                ot = pl.cdiv(outer, 2)
            ot = int(ot)
            block_bytes = ot * (per_outer + rows * _LANE * itemsize)
            x3 = x.reshape(outer, 2 * rows, _LANE)
            out3 = pl.pallas_call(
                functools.partial(_glu_kernel_folded, rows=rows,
                                  compute_dtype=cdt),
                out_shape=jax.ShapeDtypeStruct((outer, rows, _LANE), x.dtype),
                grid=(pl.cdiv(outer, ot),),
                in_specs=[pl.BlockSpec((ot, 2 * rows, _LANE),
                                       lambda o: (o, 0, 0))],
                out_specs=pl.BlockSpec((ot, rows, _LANE), lambda o: (o, 0, 0)),
                compiler_params=pltpu.CompilerParams(
                    dimension_semantics=("parallel",),
                    vmem_limit_bytes=_vmem_limit_bytes(block_bytes)),
            )(x3)
            return out3.reshape(out_shape)

        ot, rt = _pick_tiles(outer, rows, itemsize, sub, target_bytes)
        block_bytes = ot * 3 * rt * _LANE * itemsize   # 2x in + 1x out
        x4 = x.reshape(outer, 2, rows, _LANE)          # free row-major reshape
        out4 = pl.pallas_call(
            functools.partial(_glu_kernel_tiled, compute_dtype=cdt),
            out_shape=jax.ShapeDtypeStruct((outer, 1, rows, _LANE), x.dtype),
            grid=(pl.cdiv(outer, ot), pl.cdiv(rows, rt)),
            in_specs=[pl.BlockSpec((ot, 2, rt, _LANE),
                                   lambda o, t: (o, 0, t, 0))],
            out_specs=pl.BlockSpec((ot, 1, rt, _LANE),
                                   lambda o, t: (o, 0, t, 0)),
            compiler_params=pltpu.CompilerParams(
                dimension_semantics=("parallel", "parallel"),
                vmem_limit_bytes=_vmem_limit_bytes(block_bytes)),
        )(x4)
        return out4.reshape(out_shape)

    # Unaligned tail: tile the tail axis with lane-aligned blocks so VMEM is
    # bounded and all but the last block store lane-dense.
    tile = tail if tail <= _FALLBACK_TILE else _FALLBACK_TILE
    block_bytes = 3 * tile * itemsize
    x3 = x.reshape(outer, 2, tail)
    out3 = pl.pallas_call(
        functools.partial(_glu_kernel_flat, compute_dtype=cdt),
        out_shape=jax.ShapeDtypeStruct((outer, 1, tail), x.dtype),
        grid=(outer, pl.cdiv(tail, tile)),
        in_specs=[pl.BlockSpec((1, 2, tile), lambda o, t: (o, 0, t))],
        out_specs=pl.BlockSpec((1, 1, tile), lambda o, t: (o, 0, t)),
        compiler_params=pltpu.CompilerParams(
            dimension_semantics=("parallel", "parallel"),
            vmem_limit_bytes=_vmem_limit_bytes(block_bytes)),
    )(x3)
    return out3.reshape(out_shape)


class GLU:
    """Mirror of the PyTorch module: GLU(dim)(x)."""

    def __init__(self, dim: int) -> None:
        self.dim = dim

    def __call__(self, x: jax.Array) -> jax.Array:
        return glu_pallas(x, self.dim)


def _ref_glu(x, dim):
    a, g = jnp.split(x, 2, axis=dim)
    return a * jax.nn.sigmoid(g)


if __name__ == "__main__":
    key = jax.random.PRNGKey(0)
    k0, k1, k2, k3, k4 = jax.random.split(key, 5)

    glu = GLU(dim=1)

    # Primary NCHW case (tiny rows -> folded sublane path).
    x = jax.random.normal(k0, (2, 4, 16, 16), dtype=jnp.float32)
    out = jax.block_until_ready(glu(x))
    ref = _ref_glu(x, 1)
    assert out.shape == ref.shape, (out.shape, ref.shape)
    assert out.dtype == ref.dtype, (out.dtype, ref.dtype)
    assert jnp.allclose(out, ref, atol=1e-6, rtol=1e-6), "f32 NCHW mismatch"

    # Tiled path: >1 MiB forces a row split (>=2 grid steps).
    xb = jax.random.normal(k1, (1, 2, 512, 512), dtype=jnp.float32)
    outb = jax.block_until_ready(glu_pallas(xb, 1))
    assert jnp.allclose(outb, _ref_glu(xb, 1), atol=1e-5, rtol=1e-5), \
        "tiled-path mismatch"

    # cdiv / masked partial row-block path (1100 rows -> 3 blocks of 544).
    xc = jax.random.normal(k2, (1, 2, 1100, 128), dtype=jnp.float32)
    outc = jax.block_until_ready(glu_pallas(xc, 1))
    assert jnp.allclose(outc, _ref_glu(xc, 1), atol=1e-5, rtol=1e-5), \
        "partial-block mismatch"

    # bf16 (native bf16 compute on v6e/v7x, f32 upcast on v5e).
    xh = jax.random.normal(k3, (2, 4, 16, 16), dtype=jnp.bfloat16)
    outh = jax.block_until_ready(glu_pallas(xh, 1))
    refh = _ref_glu(xh.astype(jnp.float32), 1)
    assert outh.dtype == jnp.bfloat16
    assert jnp.allclose(outh.astype(jnp.float32), refh,
                        atol=2e-2, rtol=2e-2), "bf16 mismatch"

    # Non-128-aligned tail -> tiled fallback path.
    xf = jax.random.normal(k4, (2, 4, 5, 5), dtype=jnp.float32)
    outf = jax.block_until_ready(glu_pallas(xf, 1))
    assert jnp.allclose(outf, _ref_glu(xf, 1), atol=1e-6, rtol=1e-6), \
        "fallback mismatch"

    print("KERNEL_OK")
</pallas_src>

<mosaic_0001>
module attributes {stable_mosaic.version = 11 : i64} {
  func.func @_glu_kernel_folded(%arg0: i32, %arg1: memref<2x8x128xf32, #tpu.memory_space<vmem>>, %arg2: memref<2x4x128xf32, #tpu.memory_space<vmem>>) attributes {dimension_semantics = [#tpu.dimension_semantics<parallel>], iteration_bounds = array<i64: 1>, scalar_prefetch = 0 : i64, scratch_operands = 0 : i64, tpu.core_type = #tpu.core_type<tc>, window_params = [{transform_indices = @transform_0, window_bounds = array<i64: 2, 8, 128>}, {transform_indices = @transform_1, window_bounds = array<i64: 2, 4, 128>}]} {
    %c0 = arith.constant 0 : index
    %c0_0 = arith.constant 0 : index
    %c0_1 = arith.constant 0 : index
    %0 = vector.load %arg1[%c0, %c0_0, %c0_1] : memref<2x8x128xf32, #tpu.memory_space<vmem>>, vector<2x4x128xf32>
    %c0_2 = arith.constant 0 : index
    %c4 = arith.constant 4 : index
    %c0_3 = arith.constant 0 : index
    %1 = vector.load %arg1[%c0_2, %c4, %c0_3] : memref<2x8x128xf32, #tpu.memory_space<vmem>>, vector<2x4x128xf32>
    %2 = arith.negf %1 : vector<2x4x128xf32>
    %3 = math.exp %2 : vector<2x4x128xf32>
    %cst = arith.constant 1.000000e+00 : f32
    %4 = vector.broadcast %cst : f32 to vector<2x4x128xf32>
    %5 = arith.addf %4, %3 : vector<2x4x128xf32>
    %6 = arith.divf %4, %5 : vector<2x4x128xf32>
    %7 = arith.mulf %0, %6 : vector<2x4x128xf32>
    %c0_4 = arith.constant 0 : index
    %c0_5 = arith.constant 0 : index
    %c0_6 = arith.constant 0 : index
    %8 = vector.load %arg2[%c0_4, %c0_5, %c0_6] : memref<2x4x128xf32, #tpu.memory_space<vmem>>, vector<2x4x128xf32>
    tpu.vector_store %arg2[%c0_4, %c0_5, %c0_6], %7 {strides = array<i32>} : memref<2x4x128xf32, #tpu.memory_space<vmem>>, vector<2x4x128xf32>,
    return
  }
  func.func @transform_0(%arg0: i32) -> (i32, i32, i32) {
    %c0_i32 = arith.constant 0 : i32
    %c0_i32_0 = arith.constant 0 : i32
    %c0_i32_1 = arith.constant 0 : i32
    return %arg0, %c0_i32, %c0_i32_0 : i32, i32, i32
  }
  func.func @transform_1(%arg0: i32) -> (i32, i32, i32) {
    %c0_i32 = arith.constant 0 : i32
    %c0_i32_0 = arith.constant 0 : i32
    %c0_i32_1 = arith.constant 0 : i32
    return %arg0, %c0_i32, %c0_i32_0 : i32, i32, i32
  }
}

</mosaic_0001>

<llo_original>
// kernel: tpu_custom_call.1
$region0: #{tpu_custom_call.1}
  #allocation0 [shape = 'u32[]', space=smem, size = 0x4, offset = 0x4, fixed_abs, tag = 'smem constant byte address 0x4 - core index']
  #allocation1 [shape = 'u32[144,128]{1,0:T(1,128)}', space=vmem, size = 0x12000, scoped, tag = 'internal scratch']
  %s0 = inlined_call_operand.hbm [shape: f32[2,8,128], index: 0, kind: input, shape index: {}]
  %s1 = inlined_call_operand.hbm [shape: f32[2,4,128], index: 1, kind: output, shape index: {}]
  %s2 = sld [smem:[#allocation0]]
  $region18: #{tpu_custom_call.1} parent=0
    _
  %s4 = ssub.s32 1, %s2
  %s5 = scalar_select 0, %s4, %s2
  $region1: #{tpu_custom_call.1} parent=0
    #allocation2 [shape = 'u8[8192]{0}', space=vmem, size = 0x2000, scoped, tag = 'input window, operand 0, single buffered']
    #allocation3 [shape = 's32[1]{0}', space=sflag, size = 0x4, scoped, tag = 'scoped memory for tpu_custom_call.1']
    #allocation4 [shape = 's32[1]{0}', space=sflag, size = 0x4, scoped, tag = 'scoped memory for tpu_custom_call.1']
    #allocation5 [shape = 'u8[4096]{0}', space=vmem, size = 0x1000, scoped, tag = 'output window, operand 0, single buffered']
    %6 = vsyncpa [#allocation3], 0
    %7 = vsyncpa [#allocation4], 0
    // Predicated region
    $region2: #{tpu_custom_call.1} parent=1 // pred_check
      _
    $region3: #{tpu_custom_call.1} parent=1 // pred_check_branch
      %9 = sbr.rel (0) target = $region5
    $region4: #{tpu_custom_call.1} parent=1 // pred_region
      %s11 = ssub.s32 256, 256
      %12 = vsyncadd [#allocation3], %s11
      %s13 = sshll.u32 [#allocation2], 4
      %s14 = int_to_ptr.vmem [resolvable:$true] %s13
      %19 = dma.hbm_to_vmem [thread:$0]  %s0, 256, %s14, [#allocation3], 128, 128, 8
    $region5: #{tpu_custom_call.1} parent=1 // pred_fallthru
      _
    // Predicated region
    $region6: #{tpu_custom_call.1} parent=1 // pred_check
      _
    $region7: #{tpu_custom_call.1} parent=1 // pred_check_branch
      %21 = sbr.rel (0) target = $region9
    $region8: #{tpu_custom_call.1} parent=1 // pred_region
      %22 = dma.done [#allocation3], 256
    $region9: #{tpu_custom_call.1} parent=1 // pred_fallthru
      _
    %v23 = vld [vmem:[#allocation2] sm:$0xf]
    %v24 = vld [vmem:[#allocation2 + $0x8] sm:$0xf]
    %v25 = vld [vmem:[#allocation2 + $0x4] sm:$0xf]
    %v26 = vld [vmem:[#allocation2 + $0xc] sm:$0xf]
    %v27 = vxor.u32 %v25, 2147483648
    %v28 = vxor.u32 %v26, 2147483648
    %v29 = vmul.f32 %v27, 1.442695
    %v30 = vpow.pop %v29
    %v31 = vmul.f32 %v28, 1.442695
    %v32 = vpow.pop %v31
    %v33 = vadd.f32 %v30, 1.0
    %v34 = vadd.f32 %v32, 1.0
    %v35 = vrcp.pop %v33
    %v36 = vmul.f32 1.0, %v35
    %v37 = vrcp.pop %v34
    %v38 = vmul.f32 1.0, %v37
    %v39 = vmul.f32 %v23, %v36
    %v40 = vmul.f32 %v24, %v38
    %41 = vst [vmem:[#allocation5] sm:$0xf] %v39
    %42 = vst [vmem:[#allocation5 + $0x4] sm:$0xf] %v40
    // Predicated region
    $region10: #{tpu_custom_call.1} parent=1 // pred_check
      _
    $region11: #{tpu_custom_call.1} parent=1 // pred_check_branch
      %44 = sbr.rel (0) target = $region13
    $region12: #{tpu_custom_call.1} parent=1 // pred_region
      %s46 = ssub.s32 128, 128
      %47 = vsyncadd [#allocation4], %s46
      %s48 = sshll.u32 [#allocation5], 4
      %s49 = int_to_ptr.vmem [resolvable:$true] %s48
      %54 = dma.vmem_to_hbm [thread:$0]  %s49, 128, %s1, [#allocation4], 64, 64, 4
    $region13: #{tpu_custom_call.1} parent=1 // pred_fallthru
      _
    // Predicated region
    $region14: #{tpu_custom_call.1} parent=1 // pred_check
      _
    $region15: #{tpu_custom_call.1} parent=1 // pred_check_branch
      %56 = sbr.rel (0) target = $region17
    $region16: #{tpu_custom_call.1} parent=1 // pred_region
      %57 = dma.done [#allocation4], 128
    $region17: #{tpu_custom_call.1} parent=1 // pred_fallthru
      _
    %58 = vsyncpa [#allocation3], 1
    %59 = vsyncpa [#allocation4], 1

</llo_original>
